<compile_context>
chip_gen: v7x
topology: tpu7x:2x2x1
jax: 0.10.0
libtpu: 0.0.40
codegen_flags: <defaults>
</compile_context>

<pallas_src>
import jax
import jax.numpy as jnp
from jax.experimental import pallas as pl
from jax.experimental.pallas import tpu as pltpu


def _round_up(v, m):
    return ((v + m - 1) // m) * m


def _pad_to(x, shape):
    pads = [(0, t - s) for s, t in zip(x.shape, shape)]
    return jnp.pad(x, pads)


def _vmem_limit_bytes():
    """~100 MiB on 128-MiB-VMEM generations (v4/v5e/v6e), 56 MiB otherwise (v7x)."""
    try:
        kind = jax.devices()[0].device_kind.lower()
    except Exception:
        kind = ""
    if any(t in kind for t in ("v4", "v5", "v6")):
        return 100 * 1024 * 1024
    return 56 * 1024 * 1024


def _pick_tiles(n_p0):
    """Row tile tm (power-of-two multiple of 32, <=256; aim for >=2 row tiles)
    and contraction tile tk (power-of-two multiple of 128, <=2048)."""
    tm = 32
    while tm < 256 and tm * 2 <= max(32, n_p0 // 2):
        tm *= 2
    tk = 128
    while tk < 2048 and tk * 2 <= n_p0:
        tk *= 2
    return tm, tk


# ---------------------------------------------------------------------------
# Kernels
# ---------------------------------------------------------------------------
def gcn_layer1_kernel(a_ref, xs_ref, dr_ref, w1_ref, b1_ref, h1_ref, acc_ref):
    """k-step:  acc += A_tile(int8->bf16) @ (D^{-1/2} X)_tile
       last k:  h1_scaled = d_r * relu(d_r * (acc @ W1) + b1)   (bf16 output)."""
    k = pl.program_id(1)

    @pl.when(k == 0)
    def _():
        acc_ref[...] = jnp.zeros_like(acc_ref)

    a = a_ref[...].astype(jnp.bfloat16)  # 1-byte HBM storage, upcast in VMEM
    acc_ref[...] += jnp.dot(a, xs_ref[...], preferred_element_type=jnp.float32)

    @pl.when(k == pl.num_programs(1) - 1)
    def _():
        axw = jnp.dot(acc_ref[...].astype(jnp.bfloat16), w1_ref[...],
                      preferred_element_type=jnp.float32)
        h1 = jnp.maximum(dr_ref[...] * axw + b1_ref[...], 0.0)
        # Pre-scale rows by d_r so layer 2 consumes the *raw* adjacency directly.
        h1_ref[...] = (dr_ref[...] * h1).astype(h1_ref.dtype)


def gcn_layer2_fc_kernel(a_ref, h1s_ref, dr_ref, w2_ref, b2_ref,
                         w3_ref, b3_ref, out_ref, acc_ref):
    """k-step:  acc += A_tile(int8->bf16) @ h1_scaled_tile
       last k:  out = relu(d_r * (acc @ W2) + b2) @ W3 + b3      (f32 output)."""
    k = pl.program_id(1)

    @pl.when(k == 0)
    def _():
        acc_ref[...] = jnp.zeros_like(acc_ref)

    a = a_ref[...].astype(jnp.bfloat16)
    acc_ref[...] += jnp.dot(a, h1s_ref[...], preferred_element_type=jnp.float32)

    @pl.when(k == pl.num_programs(1) - 1)
    def _():
        ahw = jnp.dot(acc_ref[...].astype(jnp.bfloat16), w2_ref[...],
                      preferred_element_type=jnp.float32)
        h2 = jnp.maximum(dr_ref[...] * ahw + b2_ref[...], 0.0)
        out = jnp.dot(h2.astype(jnp.bfloat16), w3_ref[...],
                      preferred_element_type=jnp.float32) + b3_ref[...]
        out_ref[...] = out.astype(out_ref.dtype)


# ---------------------------------------------------------------------------
# Graph preprocessing (raw A_hat + D^{-1/2}; scales folded outside the A matmul)
# ---------------------------------------------------------------------------
def gcn_norm_components(edge_index, num_nodes):
    """A_hat[dst, src] (duplicates accumulated, remaining self-loops added), D^{-1/2}."""
    src, dst = edge_index[0], edge_index[1]
    adj = jnp.zeros((num_nodes, num_nodes), jnp.float32).at[dst, src].add(1.0)
    diag = jnp.diag(adj)
    adj = adj + jnp.diag(jnp.where(diag == 0.0, 1.0, 0.0))
    deg = jnp.sum(adj, axis=1)
    d_isqrt = jnp.where(deg > 0, 1.0 / jnp.sqrt(deg), 0.0)
    return adj, d_isqrt


def prepare_params(params):
    """Pad weights to 128-lane multiples and cast matmul operands to bf16 (once)."""
    din, h = params["w1"].shape
    o = params["w3"].shape[1]
    din_p = _round_up(max(din, 128), 128)
    h_p = _round_up(max(h, 128), 128)
    o_p = _round_up(max(o, 128), 128)
    return {
        "w1": _pad_to(params["w1"], (din_p, h_p)).astype(jnp.bfloat16),
        "b1": _pad_to(params["b1"].reshape(1, -1), (1, h_p)).astype(jnp.float32),
        "w2": _pad_to(params["w2"], (h_p, h_p)).astype(jnp.bfloat16),
        "b2": _pad_to(params["b2"].reshape(1, -1), (1, h_p)).astype(jnp.float32),
        "w3": _pad_to(params["w3"], (h_p, o_p)).astype(jnp.bfloat16),
        "b3": _pad_to(params["b3"].reshape(1, -1), (1, o_p)).astype(jnp.float32),
        "dims": (din, h, o, din_p, h_p, o_p),
    }


# ---------------------------------------------------------------------------
# Forward
# ---------------------------------------------------------------------------
def advanced_gnn_forward(x, edge_index, prepped):
    n, din = x.shape
    din_logical, h, o, din_p, h_p, o_p = prepped["dims"]
    assert din == din_logical

    adj, d_isqrt = gcn_norm_components(edge_index, n)

    n_p0 = _round_up(max(n, 8), 8)
    tm, tk = _pick_tiles(n_p0)
    n_p = _round_up(n_p0, max(tm, tk))      # tm | tk are powers of two -> divides
    grid = (n_p // tm, n_p // tk)

    # Raw A_hat at 1 byte/element (edge multiplicities are small integers;
    # exact up to 127 duplicate edges between a node pair).
    a_p = _pad_to(adj, (n_p, n_p)).astype(jnp.int8)
    dr_p = _pad_to(d_isqrt.reshape(-1, 1), (n_p, 1)).astype(jnp.float32)
    # Fold the column scale D^{-1/2} into X once, wrapper-side (O(N*din)).
    xs_p = _pad_to(d_isqrt[:, None] * x.astype(jnp.float32),
                   (n_p, din_p)).astype(jnp.bfloat16)

    a_spec = pl.BlockSpec((tm, tk), lambda i, k: (i, k))
    dr_spec = pl.BlockSpec((tm, 1), lambda i, k: (i, 0))

    def kslab_spec(cols):            # (tk, cols) slab moving along the k axis
        return pl.BlockSpec((tk, cols), lambda i, k: (k, 0))

    def const_spec(shape):           # grid-invariant operand: single buffer
        return pl.BlockSpec(shape, lambda i, k: (0, 0),
                            pipeline_mode=pl.Buffered(1))

    compiler_params = pltpu.CompilerParams(
        dimension_semantics=("parallel", "arbitrary"),
        vmem_limit_bytes=_vmem_limit_bytes(),
    )

    # ---- layer 1: h1_scaled = d * relu(d * (A @ (dX) @ W1) + b1) ----------
    cost1 = pl.CostEstimate(
        flops=2 * n_p * n_p * din_p + 2 * n_p * din_p * h_p,
        transcendentals=0,
        bytes_accessed=(n_p * n_p + 2 * n_p * din_p + 4 * n_p
                        + 2 * din_p * h_p + 4 * h_p + 2 * n_p * h_p),
    )
    h1s_p = pl.pallas_call(
        gcn_layer1_kernel,
        out_shape=jax.ShapeDtypeStruct((n_p, h_p), jnp.bfloat16),
        grid=grid,
        in_specs=[a_spec, kslab_spec(din_p), dr_spec,
                  const_spec((din_p, h_p)), const_spec((1, h_p))],
        out_specs=pl.BlockSpec((tm, h_p), lambda i, k: (i, 0)),
        scratch_shapes=[pltpu.VMEM((tm, din_p), jnp.float32)],
        compiler_params=compiler_params,
        cost_estimate=cost1,
    )(a_p, xs_p, dr_p, prepped["w1"], prepped["b1"])

    # ---- layer 2 + fc: out = relu(d * (A @ h1s @ W2) + b2) @ W3 + b3 ------
    cost2 = pl.CostEstimate(
        flops=2 * n_p * n_p * h_p + 2 * n_p * h_p * h_p + 2 * n_p * h_p * o_p,
        transcendentals=0,
        bytes_accessed=(n_p * n_p + 2 * n_p * h_p + 4 * n_p
                        + 2 * h_p * h_p + 4 * h_p + 2 * h_p * o_p + 4 * o_p
                        + 4 * n_p * o_p),
    )
    out_p = pl.pallas_call(
        gcn_layer2_fc_kernel,
        out_shape=jax.ShapeDtypeStruct((n_p, o_p), jnp.float32),
        grid=grid,
        in_specs=[a_spec, kslab_spec(h_p), dr_spec,
                  const_spec((h_p, h_p)), const_spec((1, h_p)),
                  const_spec((h_p, o_p)), const_spec((1, o_p))],
        out_specs=pl.BlockSpec((tm, o_p), lambda i, k: (i, 0)),
        scratch_shapes=[pltpu.VMEM((tm, h_p), jnp.float32)],
        compiler_params=compiler_params,
        cost_estimate=cost2,
    )(a_p, h1s_p, dr_p, prepped["w2"], prepped["b2"],
      prepped["w3"], prepped["b3"])

    return out_p[:n, :o]


def reference_forward(x, edge_index, params):
    adj, d = gcn_norm_components(edge_index, x.shape[0])
    a = d[:, None] * adj * d[None, :]
    h1 = jnp.maximum(a @ (x @ params["w1"]) + params["b1"], 0.0)
    h2 = jnp.maximum(a @ (h1 @ params["w2"]) + params["b2"], 0.0)
    return h2 @ params["w3"] + params["b3"]


if __name__ == "__main__":
    num_nodes = 4
    input_dim, hidden_dim, output_dim = 8, 32, 16

    key = jax.random.PRNGKey(0)
    k_x, k1, k2, k3, kb1, kb2, kb3 = jax.random.split(key, 7)

    # Fully-connected edge_index (includes self-loops), matching the module script.
    edges = [(i, j) for i in range(num_nodes) for j in range(num_nodes)]
    edge_index = jnp.array(edges, dtype=jnp.int32).T  # (2, 16)

    node_features = jax.random.normal(k_x, (num_nodes, input_dim), jnp.float32)

    params = {
        "w1": jax.random.normal(k1, (input_dim, hidden_dim), jnp.float32) * 0.1,
        "b1": jax.random.normal(kb1, (hidden_dim,), jnp.float32) * 0.05,
        "w2": jax.random.normal(k2, (hidden_dim, hidden_dim), jnp.float32) * 0.1,
        "b2": jax.random.normal(kb2, (hidden_dim,), jnp.float32) * 0.05,
        "w3": jax.random.normal(k3, (hidden_dim, output_dim), jnp.float32) * 0.1,
        "b3": jax.random.normal(kb3, (output_dim,), jnp.float32) * 0.05,
    }

    prepped = prepare_params(params)  # padded + bf16-cast once, reused per call

    out = advanced_gnn_forward(node_features, edge_index, prepped)
    out = jax.block_until_ready(out)

    ref = reference_forward(node_features, edge_index, params)
    assert out.shape == (num_nodes, output_dim)
    # bf16 MXU operands with f32 accumulation -> compare at bf16-level tolerance.
    assert jnp.allclose(out, ref, atol=5e-2, rtol=5e-2), (
        f"max abs err {float(jnp.max(jnp.abs(out - ref)))}")

    print("KERNEL_OK")
</pallas_src>

<mosaic_0001>
module attributes {stable_mosaic.version = 11 : i64} {
  func.func @gcn_layer1_kernel(%arg0: i32, %arg1: i32, %arg2: memref<32x128xi8, #tpu.memory_space<vmem>>, %arg3: memref<128x128xbf16, #tpu.memory_space<vmem>>, %arg4: memref<32x1xf32, #tpu.memory_space<vmem>>, %arg5: memref<128x128xbf16, #tpu.memory_space<vmem>>, %arg6: memref<1x128xf32, #tpu.memory_space<vmem>>, %arg7: memref<32x128xbf16, #tpu.memory_space<vmem>>, %arg8: memref<32x128xf32, #tpu.memory_space<vmem>>) attributes {dimension_semantics = [#tpu.dimension_semantics<parallel>, #tpu.dimension_semantics<arbitrary>], iteration_bounds = array<i64: 4, 1>, scalar_prefetch = 0 : i64, scratch_operands = 1 : i64, tpu.core_type = #tpu.core_type<tc>, window_params = [{transform_indices = @transform_0, window_bounds = array<i64: 32, 128>}, {transform_indices = @transform_1, window_bounds = array<i64: 128, 128>}, {transform_indices = @transform_2, window_bounds = array<i64: 32, 1>}, {pipeline_mode = #tpu.pipeline_mode<synchronous>, transform_indices = @transform_3, window_bounds = array<i64: 128, 128>}, {pipeline_mode = #tpu.pipeline_mode<synchronous>, transform_indices = @transform_4, window_bounds = array<i64: 1, 128>}, {transform_indices = @transform_5, window_bounds = array<i64: 32, 128>}]} {
    %c0_i32 = arith.constant 0 : i32
    %0 = arith.cmpi eq, %arg1, %c0_i32 : i32
    %1 = arith.extui %0 : i1 to i32
    %c0_i32_0 = arith.constant 0 : i32
    %2 = arith.cmpi ne, %1, %c0_i32_0 : i32
    scf.if %2 {
      %cst_10 = arith.constant 0.000000e+00 : f32
      %13 = vector.broadcast %cst_10 : f32 to vector<32x128xf32>
      %c0_11 = arith.constant 0 : index
      %c0_12 = arith.constant 0 : index
      %14 = vector.load %arg8[%c0_11, %c0_12] : memref<32x128xf32, #tpu.memory_space<vmem>>, vector<32x128xf32>
      tpu.vector_store %arg8[%c0_11, %c0_12], %13 {strides = array<i32>} : memref<32x128xf32, #tpu.memory_space<vmem>>, vector<32x128xf32>,
    } else {
    }
    %c0 = arith.constant 0 : index
    %c0_1 = arith.constant 0 : index
    %3 = vector.load %arg2[%c0, %c0_1] : memref<32x128xi8, #tpu.memory_space<vmem>>, vector<32x128xi8>
    %4 = arith.sitofp %3 : vector<32x128xi8> to vector<32x128xbf16>
    %c0_2 = arith.constant 0 : index
    %c0_3 = arith.constant 0 : index
    %5 = vector.load %arg8[%c0_2, %c0_3] : memref<32x128xf32, #tpu.memory_space<vmem>>, vector<32x128xf32>
    %c0_4 = arith.constant 0 : index
    %c0_5 = arith.constant 0 : index
    %6 = vector.load %arg3[%c0_4, %c0_5] : memref<128x128xbf16, #tpu.memory_space<vmem>>, vector<128x128xbf16>
    %cst = arith.constant dense<0.000000e+00> : vector<32x128xf32>
    %7 = tpu.matmul %4, %6, %cst {dimension_numbers = #tpu.dot_dimension_numbers<[1], [0], [0], [1], [0, 0, 1, 1], [], []>} : vector<32x128xbf16>, vector<128x128xbf16>, vector<32x128xf32> -> vector<32x128xf32>
    %8 = arith.addf %5, %7 : vector<32x128xf32>
    %c0_6 = arith.constant 0 : index
    %c0_7 = arith.constant 0 : index
    %9 = vector.load %arg8[%c0_6, %c0_7] : memref<32x128xf32, #tpu.memory_space<vmem>>, vector<32x128xf32>
    tpu.vector_store %arg8[%c0_6, %c0_7], %8 {strides = array<i32>} : memref<32x128xf32, #tpu.memory_space<vmem>>, vector<32x128xf32>,
    %c0_i32_8 = arith.constant 0 : i32
    %10 = arith.cmpi eq, %arg1, %c0_i32_8 : i32
    %11 = arith.extui %10 : i1 to i32
    %c0_i32_9 = arith.constant 0 : i32
    %12 = arith.cmpi ne, %11, %c0_i32_9 : i32
    scf.if %12 {
      %c0_10 = arith.constant 0 : index
      %c0_11 = arith.constant 0 : index
      %13 = vector.load %arg8[%c0_10, %c0_11] : memref<32x128xf32, #tpu.memory_space<vmem>>, vector<32x128xf32>
      %14 = arith.truncf %13 : vector<32x128xf32> to vector<32x128xbf16>
      %c0_12 = arith.constant 0 : index
      %c0_13 = arith.constant 0 : index
      %15 = vector.load %arg5[%c0_12, %c0_13] : memref<128x128xbf16, #tpu.memory_space<vmem>>, vector<128x128xbf16>
      %cst_14 = arith.constant dense<0.000000e+00> : vector<32x128xf32>
      %16 = tpu.matmul %14, %15, %cst_14 {dimension_numbers = #tpu.dot_dimension_numbers<[1], [0], [0], [1], [0, 0, 1, 1], [], []>} : vector<32x128xbf16>, vector<128x128xbf16>, vector<32x128xf32> -> vector<32x128xf32>
      %c0_15 = arith.constant 0 : index
      %c0_16 = arith.constant 0 : index
      %17 = vector.load %arg4[%c0_15, %c0_16] : memref<32x1xf32, #tpu.memory_space<vmem>>, vector<32x1xf32>
      %18 = vector.broadcast %17 : vector<32x1xf32> to vector<32x128xf32>
      %19 = arith.mulf %18, %16 : vector<32x128xf32>
      %c0_17 = arith.constant 0 : index
      %c0_18 = arith.constant 0 : index
      %20 = vector.load %arg6[%c0_17, %c0_18] : memref<1x128xf32, #tpu.memory_space<vmem>>, vector<1x128xf32>
      %21 = vector.broadcast %20 : vector<1x128xf32> to vector<32x128xf32>
      %22 = arith.addf %19, %21 : vector<32x128xf32>
      %cst_19 = arith.constant 0.000000e+00 : f32
      %23 = vector.broadcast %cst_19 : f32 to vector<32x128xf32>
      %24 = arith.maximumf %22, %23 : vector<32x128xf32>
      %c0_20 = arith.constant 0 : index
      %c0_21 = arith.constant 0 : index
      %25 = vector.load %arg4[%c0_20, %c0_21] : memref<32x1xf32, #tpu.memory_space<vmem>>, vector<32x1xf32>
      %26 = vector.broadcast %25 : vector<32x1xf32> to vector<32x128xf32>
      %27 = arith.mulf %26, %24 : vector<32x128xf32>
      %28 = arith.truncf %27 : vector<32x128xf32> to vector<32x128xbf16>
      %c0_22 = arith.constant 0 : index
      %c0_23 = arith.constant 0 : index
      %29 = vector.load %arg7[%c0_22, %c0_23] : memref<32x128xbf16, #tpu.memory_space<vmem>>, vector<32x128xbf16>
      tpu.vector_store %arg7[%c0_22, %c0_23], %28 {strides = array<i32>} : memref<32x128xbf16, #tpu.memory_space<vmem>>, vector<32x128xbf16>,
    } else {
    }
    return
  }
  func.func @transform_0(%arg0: i32, %arg1: i32) -> (i32, i32) {
    %c0_i32 = arith.constant 0 : i32
    return %arg0, %arg1 : i32, i32
  }
  func.func @transform_1(%arg0: i32, %arg1: i32) -> (i32, i32) {
    %c0_i32 = arith.constant 0 : i32
    %c0_i32_0 = arith.constant 0 : i32
    return %arg1, %c0_i32 : i32, i32
  }
  func.func @transform_2(%arg0: i32, %arg1: i32) -> (i32, i32) {
    %c0_i32 = arith.constant 0 : i32
    %c0_i32_0 = arith.constant 0 : i32
    return %arg0, %c0_i32 : i32, i32
  }
  func.func @transform_3(%arg0: i32, %arg1: i32) -> (i32, i32) {
    %c0_i32 = arith.constant 0 : i32
    %c0_i32_0 = arith.constant 0 : i32
    %c0_i32_1 = arith.constant 0 : i32
    return %c0_i32, %c0_i32_0 : i32, i32
  }
  func.func @transform_4(%arg0: i32, %arg1: i32) -> (i32, i32) {
    %c0_i32 = arith.constant 0 : i32
    %c0_i32_0 = arith.constant 0 : i32
    %c0_i32_1 = arith.constant 0 : i32
    return %c0_i32, %c0_i32_0 : i32, i32
  }
  func.func @transform_5(%arg0: i32, %arg1: i32) -> (i32, i32) {
    %c0_i32 = arith.constant 0 : i32
    %c0_i32_0 = arith.constant 0 : i32
    return %arg0, %c0_i32 : i32, i32
  }
}

</mosaic_0001>

<llo_original>
// kernel: tpu_custom_call.1
$region0: #{tpu_custom_call.1}
  #allocation0 [shape = 'u32[]', space=smem, size = 0x4, offset = 0x4, fixed_abs, tag = 'smem constant byte address 0x4 - core index']
  #allocation1 [shape = 'u32[144,128]{1,0:T(1,128)}', space=vmem, size = 0x12000, scoped, tag = 'internal scratch']
  #allocation2 [shape = 'f32[32,128]{1,0:T(8,128)}', space=vmem, size = 0x4000, scoped, tag = 'scratch operand']
  %s0 = inlined_call_operand.hbm [shape: s8[128,128], index: 0, kind: input, shape index: {}]
  %s1 = inlined_call_operand.vmem [shape: bf16[128,128], index: 1, kind: input, shape index: {}]
  %s2 = inlined_call_operand.vmem [shape: f32[128,1], index: 2, kind: input, shape index: {}]
  %s3 = inlined_call_operand.vmem [shape: bf16[128,128], index: 3, kind: input, shape index: {}]
  %s4 = inlined_call_operand.vmem [shape: f32[1,128], index: 4, kind: input, shape index: {}]
  %s5 = inlined_call_operand.hbm [shape: bf16[128,128], index: 5, kind: output, shape index: {}]
  %s6 = sld [smem:[#allocation0]]
  $region65: #{tpu_custom_call.1} parent=0
    _
  %s8 = ssub.s32 1, %s6
  %s9 = scalar_select 0, %s8, %s6
  $region1: #{tpu_custom_call.1} parent=0
    #allocation3 [shape = 'u8[8192]{0}', space=vmem, size = 0x2000, scoped, tag = 'input window, operand 0']
    #allocation4 [shape = 's32[2]{0}', space=sflag, size = 0x8, scoped, tag = 'scoped memory for tpu_custom_call.1']
    #allocation5 [shape = 's32[2]{0}', space=sflag, size = 0x8, scoped, tag = 'scoped memory for tpu_custom_call.1']
    #allocation6 [shape = 'u8[16384]{0}', space=vmem, size = 0x4000, scoped, tag = 'output window, operand 0']
    %10 = vsyncpa [#allocation4], 0
    %s11 = scalar_lea.sflag [#allocation4], 1
    %12 = vsyncpa %s11, 0
    %13 = vsyncpa [#allocation5], 0
    %s14 = scalar_lea.sflag [#allocation5], 1
    %15 = vsyncpa %s14, 0
    loop: start=0, step=1, limit=6
    $region2: #{tpu_custom_call.1} parent=1 // loop_pre_header
      _
    $region3: #{tpu_custom_call.1} parent=1 // loop_header
      %s17 = sphi 0, %s21
      %p18 = scmp.ge.s32.totalorder %s17, 6
      %s24 = sphi 0, %s36
      %s25 = sphi 0, %s32
      %s26 = sphi 0, %s24
      %s27 = sphi 0, %s25
      %s28 = sphi 0, %s26
      %s29 = sphi 0, %s27
      %s41 = sphi 0, %s43
      %s44 = sphi 0, %s41
      %s45 = sphi 0, %s44
      %s61 = sphi 0, %s45
      %s67 = sphi 0, %s69
      %s70 = sphi 0, %s67
      %s71 = sphi 0, %s70
      %s87 = sphi 0, %s71
      %s93 = sphi 0, %s95
      %s96 = sphi 0, %s93
      %s97 = sphi 0, %s96
      %s113 = sphi 0, %s97
      %s117 = sphi 0, %s117
      %s119 = sphi 0, %s117
      %s120 = sphi 0, %s119
      %s134 = sphi 0, %s120
      %s138 = sphi 0, %s138
      %s140 = sphi 0, %s138
      %s141 = sphi 0, %s140
      %s155 = sphi 0, %s141
      %s161 = sphi 0, %s163
      %s164 = sphi 0, %s161
      %s165 = sphi 0, %s164
      %s181 = sphi 0, %s165
    $region4: #{tpu_custom_call.1} parent=1 // loop_header_branch
      %20 = sbr.rel (%p18) target = $region8
    $region5: #{tpu_custom_call.1} parent=1 // loop_body
      %s22 = ssub.s32 %s17, 1
      %s23 = ssub.s32 %s17, 2
      %s30 = sadd.s32 1, %s25
      %p31 = scmp.ge.s32.totalorder %s30, 1
      %s32 = scalar_select %p31, 0, %s30
      %s33 = sadd.s32 1, %s24
      %s34 = scalar_select %p31, %s33, %s24
      %p35 = scmp.ge.s32.totalorder %s34, 4
      %s36 = scalar_select %p35, 0, %s34
      %s37 = ssub.s32 %s24, %s36
      %s38 = ssub.s32 %s25, %s32
      %s39 = sor.u32 %s37, %s38
      %p40 = scmp.eq.s32.totalorder %s39, 0
      %s42 = sadd.s32 %s41, 1
      %s43 = scalar_select %p40, %s41, %s42
      %p46 = pneg %p40
      %p47 = scmp.eq.s32.totalorder %s17, 3
      %p48 = por %p46, %p47
      %p49 = scmp.ne.s32.totalorder %s41, %s44
      %p50 = scmp.eq.s32.totalorder %s17, 0
      %p51 = por %p49, %p50
      %p52 = scmp.ne.s32.totalorder %s41, %s44
      %p53 = scmp.eq.s32.totalorder %s22, 3
      %p54 = por %p52, %p53
      %p55 = scmp.ne.s32.totalorder %s44, %s45
      %p56 = scmp.eq.s32.totalorder %s22, 0
      %p57 = por %p55, %p56
      %p58 = scmp.ne.s32.totalorder %s44, %s45
      %p59 = scmp.eq.s32.totalorder %s23, 3
      %p60 = por %p58, %p59
      %p62 = scmp.ne.s32.totalorder %s45, %s61
      %p63 = scmp.eq.s32.totalorder %s23, 0
      %p64 = por %p62, %p63
      %s65 = ssub.s32 %s25, %s32
      %p66 = scmp.eq.s32.totalorder %s65, 0
      %s68 = sadd.s32 %s67, 1
      %s69 = scalar_select %p66, %s67, %s68
      %p72 = pneg %p66
      %p73 = scmp.eq.s32.totalorder %s17, 3
      %p74 = por %p72, %p73
      %p75 = scmp.ne.s32.totalorder %s67, %s70
      %p76 = scmp.eq.s32.totalorder %s17, 0
      %p77 = por %p75, %p76
      %p78 = scmp.ne.s32.totalorder %s67, %s70
      %p79 = scmp.eq.s32.totalorder %s22, 3
      %p80 = por %p78, %p79
      %p81 = scmp.ne.s32.totalorder %s70, %s71
      %p82 = scmp.eq.s32.totalorder %s22, 0
      %p83 = por %p81, %p82
      %p84 = scmp.ne.s32.totalorder %s70, %s71
      %p85 = scmp.eq.s32.totalorder %s23, 3
      %p86 = por %p84, %p85
      %p88 = scmp.ne.s32.totalorder %s71, %s87
      %p89 = scmp.eq.s32.totalorder %s23, 0
      %p90 = por %p88, %p89
      %s91 = ssub.s32 %s24, %s36
      %p92 = scmp.eq.s32.totalorder %s91, 0
      %s94 = sadd.s32 %s93, 1
      %s95 = scalar_select %p92, %s93, %s94
      %p98 = pneg %p92
      %p99 = scmp.eq.s32.totalorder %s17, 3
      %p100 = por %p98, %p99
      %p101 = scmp.ne.s32.totalorder %s93, %s96
      %p102 = scmp.eq.s32.totalorder %s17, 0
      %p103 = por %p101, %p102
      %p104 = scmp.ne.s32.totalorder %s93, %s96
      %p105 = scmp.eq.s32.totalorder %s22, 3
      %p106 = por %p104, %p105
      %p107 = scmp.ne.s32.totalorder %s96, %s97
      %p108 = scmp.eq.s32.totalorder %s22, 0
      %p109 = por %p107, %p108
      %p110 = scmp.ne.s32.totalorder %s96, %s97
      %p111 = scmp.eq.s32.totalorder %s23, 3
      %p112 = por %p110, %p111
      %p114 = scmp.ne.s32.totalorder %s97, %s113
      %p115 = scmp.eq.s32.totalorder %s23, 0
      %p116 = por %p114, %p115
      %s118 = sadd.s32 %s117, 1
      %p121 = scmp.eq.s32.totalorder %s17, 3
      %p122 = scmp.ne.s32.totalorder %s117, %s119
      %p123 = scmp.eq.s32.totalorder %s17, 0
      %p124 = por %p122, %p123
      %p125 = scmp.ne.s32.totalorder %s117, %s119
      %p126 = scmp.eq.s32.totalorder %s22, 3
      %p127 = por %p125, %p126
      %p128 = scmp.ne.s32.totalorder %s119, %s120
      %p129 = scmp.eq.s32.totalorder %s22, 0
      %p130 = por %p128, %p129
      %p131 = scmp.ne.s32.totalorder %s119, %s120
      %p132 = scmp.eq.s32.totalorder %s23, 3
      %p133 = por %p131, %p132
      %p135 = scmp.ne.s32.totalorder %s120, %s134
      %p136 = scmp.eq.s32.totalorder %s23, 0
      %p137 = por %p135, %p136
      %s139 = sadd.s32 %s138, 1
      %p142 = scmp.eq.s32.totalorder %s17, 3
      %p143 = scmp.ne.s32.totalorder %s138, %s140
      %p144 = scmp.eq.s32.totalorder %s17, 0
      %p145 = por %p143, %p144
      %p146 = scmp.ne.s32.totalorder %s138, %s140
      %p147 = scmp.eq.s32.totalorder %s22, 3
      %p148 = por %p146, %p147
      %p149 = scmp.ne.s32.totalorder %s140, %s141
      %p150 = scmp.eq.s32.totalorder %s22, 0
      %p151 = por %p149, %p150
      %p152 = scmp.ne.s32.totalorder %s140, %s141
      %p153 = scmp.eq.s32.totalorder %s23, 3
      %p154 = por %p152, %p153
      %p156 = scmp.ne.s32.totalorder %s141, %s155
      %p157 = scmp.eq.s32.totalorder %s23, 0
      %p158 = por %p156, %p157
      %s159 = ssub.s32 %s24, %s36
      %p160 = scmp.eq.s32.totalorder %s159, 0
      %s162 = sadd.s32 %s161, 1
      %s163 = scalar_select %p160, %s161, %s162
      %p166 = pneg %p160
      %p167 = scmp.eq.s32.totalorder %s17, 3
      %p168 = por %p166, %p167
      %p169 = scmp.ne.s32.totalorder %s161, %s164
      %p170 = scmp.eq.s32.totalorder %s17, 0
      %p171 = por %p169, %p170
      %p172 = scmp.ne.s32.totalorder %s161, %s164
      %p173 = scmp.eq.s32.totalorder %s22, 3
      %p174 = por %p172, %p173
      %p175 = scmp.ne.s32.totalorder %s164, %s165
      %p176 = scmp.eq.s32.totalorder %s22, 0
      %p177 = por %p175, %p176
      %p178 = scmp.ne.s32.totalorder %s164, %s165
      %p179 = scmp.eq.s32.totalorder %s23, 3
      %p180 = por %p178, %p179
      %p182 = scmp.ne.s32.totalorder %s165, %s181
      %p183 = scmp.eq.s32.totalorder %s23, 0
      %p184 = por %p182, %p183
      %p185 = scmp.le.s32.totalorder 1, %s17
      %p186 = scmp.lt.s32.totalorder %s17, 5
      %p187 = pnand %p185, %p186
      %p188 = pneg %p187
      // Predicated region
      $region9: #{tpu_custom_call.1} parent=5 // pred_check
        _
      $region10: #{tpu_custom_call.1} parent=5 // pred_check_branch
        %190 = sbr.rel (%p187) target = $region12
      $region11: #{tpu_custom_call.1} parent=5 // pred_region
        %s191 = ssub.s32 %s17, 1
        // Predicated region
        $region13: #{tpu_custom_call.1} parent=11 // pred_check
          %p192 = pneg %p83
        $region14: #{tpu_custom_call.1} parent=11 // pred_check_branch
          %194 = sbr.rel (%p192) target = $region16
        $region15: #{tpu_custom_call.1} parent=11 // pred_region
          %s195 = smul.u32 16, %s27
          %p196 = scmp.lt.s32.totalorder %s195, 15
          %s197 = scalar_select %p196, %s195, 15
          %s198 = smul.addr %s197, 4
          %s199 = scalar_lea.vmem %s1, %s198
          %s200 = smul.u32 16, %s27
        $region16: #{tpu_custom_call.1} parent=11 // pred_fallthru
          _
        // Predicated region
        $region17: #{tpu_custom_call.1} parent=11 // pred_check
          %p201 = pneg %p130
        $region18: #{tpu_custom_call.1} parent=11 // pred_check_branch
          %203 = sbr.rel (%p201) target = $region20
        $region19: #{tpu_custom_call.1} parent=11 // pred_region
          _
        $region20: #{tpu_custom_call.1} parent=11 // pred_fallthru
          _
        // Predicated region
        $region21: #{tpu_custom_call.1} parent=11 // pred_check
          %p204 = pneg %p151
        $region22: #{tpu_custom_call.1} parent=11 // pred_check_branch
          %206 = sbr.rel (%p204) target = $region24
        $region23: #{tpu_custom_call.1} parent=11 // pred_region
          _
        $region24: #{tpu_custom_call.1} parent=11 // pred_fallthru
          _
      $region12: #{tpu_custom_call.1} parent=5 // pred_fallthru
        _
      %p207 = scmp.lt.s32.totalorder %s17, 4
      // Predicated region
      $region25: #{tpu_custom_call.1} parent=5 // pred_check
        %p208 = pneg %p207
      $region26: #{tpu_custom_call.1} parent=5 // pred_check_branch
        %210 = sbr.rel (%p208) target = $region28
      $region27: #{tpu_custom_call.1} parent=5 // pred_region
        // Predicated region
        $region29: #{tpu_custom_call.1} parent=27 // pred_check
          %p211 = pneg %p51
        $region30: #{tpu_custom_call.1} parent=27 // pred_check_branch
          %213 = sbr.rel (%p211) target = $region32
        $region31: #{tpu_custom_call.1} parent=27 // pred_region
          %s214 = sand.u32 %s41, 1
          %s215 = scalar_lea.sflag [#allocation4], %s214
          %s216 = sand.u32 %s41, 1
          %s217 = smul.addr %s216, 8
          %s218 = scalar_lea.vmem [#allocation3], %s217
          %s220 = ssub.s32 128, 128
          %221 = vsyncadd %s215, %s220
          %s222 = sadd.s32 %s25, %s24
          %s223 = smul.addr %s222, 128
          %s224 = scalar_lea.hbm %s0, %s223
          %s226 = sshll.u32 %s218, 4
          %s227 = int_to_ptr.vmem [resolvable:$true] %s226
          %229 = dma.hbm_to_vmem [thread:$0]  %s224, 128, %s227, %s215
        $region32: #{tpu_custom_call.1} parent=27 // pred_fallthru
          _
        // Predicated region
        $region33: #{tpu_custom_call.1} parent=27 // pred_check
          %p230 = pneg %p103
        $region34: #{tpu_custom_call.1} parent=27 // pred_check_branch
          %232 = sbr.rel (%p230) target = $region36
        $region35: #{tpu_custom_call.1} parent=27 // pred_region
          %s233 = smul.u32 4, %s24
          %p234 = scmp.lt.s32.totalorder %s233, 15
          %s235 = scalar_select %p234, %s233, 15
          %s236 = smul.addr %s235, 8
          %s237 = scalar_lea.vmem %s2, %s236
          %s238 = smul.u32 4, %s24
        $region36: #{tpu_custom_call.1} parent=27 // pred_fallthru
          _
      $region28: #{tpu_custom_call.1} parent=5 // pred_fallthru
        _
      %p239 = scmp.le.s32.totalorder 1, %s17
      %p240 = scmp.lt.s32.totalorder %s17, 5
      %p241 = pnand %p239, %p240
      %p242 = pneg %p241
      // Predicated region
      $region37: #{tpu_custom_call.1} parent=5 // pred_check
        _
      $region38: #{tpu_custom_call.1} parent=5 // pred_check_branch
        %244 = sbr.rel (%p241) target = $region40
      $region39: #{tpu_custom_call.1} parent=5 // pred_region
        %s245 = ssub.s32 %s17, 1
        %s246 = sand.u32 %s44, 1
        %s247 = scalar_lea.sflag [#allocation4], %s246
        %s248 = sand.u32 %s44, 1
        %s249 = smul.addr %s248, 8
        %s250 = scalar_lea.vmem [#allocation3], %s249
        // Predicated region
        $region41: #{tpu_custom_call.1} parent=39 // pred_check
          %p251 = pneg %p57
        $region42: #{tpu_custom_call.1} parent=39 // pred_check_branch
          %253 = sbr.rel (%p251) target = $region44
        $region43: #{tpu_custom_call.1} parent=39 // pred_region
          %254 = dma.done %s247, 128
        $region44: #{tpu_custom_call.1} parent=39 // pred_fallthru
          _
        %s255 = sand.u32 %s44, 1
        %s256 = scalar_lea.sflag [#allocation4], %s255
        %s257 = sand.u32 %s44, 1
        %s258 = smul.addr %s257, 8
        %s259 = scalar_lea.vmem [#allocation3], %s258
        %p260 = pneg %p57
        %p261 = pneg %p54
        %s262 = smul.u32 16, %s27
        %p263 = scmp.lt.s32.totalorder %s262, 15
        %s264 = scalar_select %p263, %s262, 15
        %s265 = smul.addr %s264, 4
        %s266 = scalar_lea.vmem %s1, %s265
        %p267 = pneg %p83
        %p268 = pneg %p80
        %s269 = smul.u32 4, %s26
        %p270 = scmp.lt.s32.totalorder %s269, 15
        %s271 = scalar_select %p270, %s269, 15
        %s272 = smul.addr %s271, 8
        %s273 = scalar_lea.vmem %s2, %s272
        %p274 = pneg %p109
        %p275 = pneg %p106
        %p276 = pneg %p130
        %p277 = pneg %p127
        %p278 = pneg %p151
        %p279 = pneg %p148
        %p280 = pneg %p177
        %p281 = pneg %p174
        %s282 = sand.u32 %s164, 1
        %s283 = scalar_lea.sflag [#allocation5], %s282
        %s284 = sand.u32 %s164, 1
        %s285 = smul.addr %s284, 16
        %s286 = scalar_lea.vmem [#allocation6], %s285
        %s287 = smul.u32 16, %s27
        %p288 = scmp.lt.s32.totalorder %s287, 15
        %s289 = scalar_select %p288, %s287, 15
        %s290 = smul.addr %s289, 4
        %s291 = scalar_lea.vmem %s1, %s290
        %s292 = smul.u32 16, %s27
        %s293 = smul.u32 4, %s26
        %p294 = scmp.lt.s32.totalorder %s293, 15
        %s295 = scalar_select %p294, %s293, 15
        %s296 = smul.addr %s295, 8
        %s297 = scalar_lea.vmem %s2, %s296
        %s298 = smul.u32 4, %s26
        %s299 = smul.u32 4, %s26
        %p301 = scmp.eq.s32.totalorder %s27, 0
        // Predicated region
        $region45: #{tpu_custom_call.1} parent=39 // pred_check
          %p302 = pneg %p301
        $region46: #{tpu_custom_call.1} parent=39 // pred_check_branch
          %304 = sbr.rel (%p302) target = $region48
        $region47: #{tpu_custom_call.1} parent=39 // pred_region
          %305 = vst [vmem:[#allocation2] sm:$0xff] 0.0
          %306 = vst [vmem:[#allocation2 + $0x8] sm:$0xff] 0.0
          %307 = vst [vmem:[#allocation2 + $0x10] sm:$0xff] 0.0
          %308 = vst [vmem:[#allocation2 + $0x18] sm:$0xff] 0.0
        $region48: #{tpu_custom_call.1} parent=39 // pred_fallthru
          _
        %v309 = vld [vmem:[%s250] sm:$0xff]
        %v310 = vunpack.c.l.s8.bf16 %v309
        %v311 = vunpack.c.h.s8.bf16 %v309
        %v312 = vld [vmem:[#allocation2] sm:$0xff]
        %v313 = vld [vmem:[#allocation2 + $0x8] sm:$0xff]
        %v314 = vld [vmem:[#allocation2 + $0x10] sm:$0xff]
        %v315 = vld [vmem:[#allocation2 + $0x18] sm:$0xff]
        %v316 = vld [vmem:[%s291] sm:$0xf]
        %v317 = vld [vmem:[%s291 + $0x4] sm:$0xf]
        %v318 = vld [vmem:[%s291 + $0x8] sm:$0xf]
        %v319 = vld [vmem:[%s291 + $0xc] sm:$0xf]
        %v320 = vld [vmem:[%s291 + $0x10] sm:$0xf]
        %v321 = vld [vmem:[%s291 + $0x14] sm:$0xf]
        %v322 = vld [vmem:[%s291 + $0x18] sm:$0xf]
        %v323 = vld [vmem:[%s291 + $0x1c] sm:$0xf]
        %v324 = vld [vmem:[%s291 + $0x20] sm:$0xf]
        %v325 = vld [vmem:[%s291 + $0x24] sm:$0xf]
        %v326 = vld [vmem:[%s291 + $0x28] sm:$0xf]
        %v327 = vld [vmem:[%s291 + $0x2c] sm:$0xf]
        %v328 = vld [vmem:[%s291 + $0x30] sm:$0xf]
        %v329 = vld [vmem:[%s291 + $0x34] sm:$0xf]
        %v330 = vld [vmem:[%s291 + $0x38] sm:$0xf]
        %v331 = vld [vmem:[%s291 + $0x3c] sm:$0xf]
        %v348 = vunpack.c.l.b16 %v316
        %v349 = vunpack.c.l.b16 %v317
        %v350 = vunpack.c.l.b16 %v318
        %v351 = vunpack.c.l.b16 %v319
        %v352 = vunpack.c.l.b16 %v320
        %v353 = vunpack.c.l.b16 %v321
        %v354 = vunpack.c.l.b16 %v322
        %v355 = vunpack.c.l.b16 %v323
        %v356 = vunpack.c.l.b16 %v324
        %v357 = vunpack.c.l.b16 %v325
        %v358 = vunpack.c.l.b16 %v326
        %v359 = vunpack.c.l.b16 %v327
        %v360 = vunpack.c.l.b16 %v328
        %v361 = vunpack.c.l.b16 %v329
        %v362 = vunpack.c.l.b16 %v330
        %v363 = vunpack.c.l.b16 %v331
        %v364 = vpack.c.b16 %v349, %v348
        %v365 = vpack.c.b16 %v351, %v350
        %v366 = vpack.c.b16 %v353, %v352
        %v367 = vpack.c.b16 %v355, %v354
        %v368 = vpack.c.b16 %v357, %v356
        %v369 = vpack.c.b16 %v359, %v358
        %v370 = vpack.c.b16 %v361, %v360
        %v371 = vpack.c.b16 %v363, %v362
        %380 = vmatprep.subr.bf16.mxu0 0
        %381 = vmatpush1.bf16.msra.mxu0 %v364
        %382 = vmatprep.subr.bf16.mxu0 0
        %383 = vmatpush1.bf16.msra.mxu0 %v365
        %384 = vmatprep.subr.bf16.mxu0 0
        %385 = vmatpush1.bf16.msra.mxu0 %v366
        %386 = vmatprep.subr.bf16.mxu0 0
        %387 = vmatpush1.bf16.msra.mxu0 %v367
        %388 = vmatprep.subr.bf16.mxu0 0
        %389 = vmatpush1.bf16.msra.mxu0 %v368
        %390 = vmatprep.subr.bf16.mxu0 0
        %391 = vmatpush1.bf16.msra.mxu0 %v369
        %392 = vmatprep.subr.bf16.mxu0 0
        %393 = vmatpush1.bf16.msra.mxu0 %v370
        %394 = vmatprep.subr.bf16.mxu0 0
        %395 = vmatpush1.bf16.msra.mxu0 %v371
        %396 = vmatprep.subr.bf16.mxu0 0
        %397 = vmatpush1.bf16.msra.mxu0 0
        %398 = vmatprep.subr.bf16.mxu0 0
        %399 = vmatpush1.bf16.msra.mxu0 0
        %400 = vmatprep.subr.bf16.mxu0 0
        %401 = vmatpush1.bf16.msra.mxu0 0
        %402 = vmatprep.subr.bf16.mxu0 0
        %403 = vmatpush1.bf16.msra.mxu0 0
        %404 = vmatprep.subr.bf16.mxu0 0
        %405 = vmatpush1.bf16.msra.mxu0 0
        %406 = vmatprep.subr.bf16.mxu0 0
        %407 = vmatpush1.bf16.msra.mxu0 0
        %408 = vmatprep.subr.bf16.mxu0 0
        %409 = vmatpush1.bf16.msra.mxu0 0
        %410 = vmatprep.subr.bf16.mxu0 0
        %411 = vmatpush1.bf16.msra.mxu0 0
        %412 = vmatprep.mubr.bf16.mxu0 0
        %413 = vmatmul.mubr.bf16.gmra.mrb[0].mxu0 %v310
        %v414 = vpop.f32.mrb[0].mxu0
        %v415 = vadd.f32 0.0, %v414
        %v416 = vpop.f32.mrb[0].mxu0
        %v417 = vpop.f32.mrb[0].mxu0
        %v418 = vadd.f32 0.0, %v417
        %v419 = vpop.f32.mrb[0].mxu0
        %420 = vmatprep.mubr.bf16.mxu0 0
        %421 = vmatmul.mubr.bf16.gmra.mrb[0].mxu0 %v311
        %v422 = vpop.f32.mrb[0].mxu0
        %v423 = vadd.f32 0.0, %v422
        %v424 = vpop.f32.mrb[0].mxu0
        %v425 = vpop.f32.mrb[0].mxu0
        %v426 = vadd.f32 0.0, %v425
        %v427 = vpop.f32.mrb[0].mxu0
        %428 = vdwg.mxu0
        %v429 = vadd.f32 %v312, %v415
        %v430 = vadd.f32 %v313, %v418
        %v431 = vadd.f32 %v314, %v423
        %v432 = vadd.f32 %v315, %v426
        %433 = vst [vmem:[#allocation2] sm:$0xff] %v429
        %434 = vst [vmem:[#allocation2 + $0x8] sm:$0xff] %v430
        %435 = vst [vmem:[#allocation2 + $0x10] sm:$0xff] %v431
        %436 = vst [vmem:[#allocation2 + $0x18] sm:$0xff] %v432
        // Predicated region
        $region49: #{tpu_custom_call.1} parent=39 // pred_check
          %p437 = pneg %p301
        $region50: #{tpu_custom_call.1} parent=39 // pred_check_branch
          %439 = sbr.rel (%p437) target = $region52
        $region51: #{tpu_custom_call.1} parent=39 // pred_region
          %v440 = vld [vmem:[#allocation2] sm:$0xff]
          %v441 = vld [vmem:[#allocation2 + $0x8] sm:$0xff]
          %v442 = vld [vmem:[#allocation2 + $0x10] sm:$0xff]
          %v443 = vld [vmem:[#allocation2 + $0x18] sm:$0xff]
          %v444 = vpack.c.bf16 %v441, %v440
          %v445 = vpack.c.bf16 %v443, %v442
          %v446 = vld [vmem:[%s3] sm:$0xf]
          %v447 = vld [vmem:[%s3 + $0x4] sm:$0xf]
          %v448 = vld [vmem:[%s3 + $0x8] sm:$0xf]
          %v449 = vld [vmem:[%s3 + $0xc] sm:$0xf]
          %v450 = vld [vmem:[%s3 + $0x10] sm:$0xf]
          %v451 = vld [vmem:[%s3 + $0x14] sm:$0xf]
          %v452 = vld [vmem:[%s3 + $0x18] sm:$0xf]
          %v453 = vld [vmem:[%s3 + $0x1c] sm:$0xf]
          %v454 = vld [vmem:[%s3 + $0x20] sm:$0xf]
          %v455 = vld [vmem:[%s3 + $0x24] sm:$0xf]
          %v456 = vld [vmem:[%s3 + $0x28] sm:$0xf]
          %v457 = vld [vmem:[%s3 + $0x2c] sm:$0xf]
          %v458 = vld [vmem:[%s3 + $0x30] sm:$0xf]
          %v459 = vld [vmem:[%s3 + $0x34] sm:$0xf]
          %v460 = vld [vmem:[%s3 + $0x38] sm:$0xf]
          %v461 = vld [vmem:[%s3 + $0x3c] sm:$0xf]
          %v478 = vunpack.c.l.b16 %v446
          %v479 = vunpack.c.l.b16 %v447
          %v480 = vunpack.c.l.b16 %v448
          %v481 = vunpack.c.l.b16 %v449
          %v482 = vunpack.c.l.b16 %v450
          %v483 = vunpack.c.l.b16 %v451
          %v484 = vunpack.c.l.b16 %v452
          %v485 = vunpack.c.l.b16 %v453
          %v486 = vunpack.c.l.b16 %v454
          %v487 = vunpack.c.l.b16 %v455
          %v488 = vunpack.c.l.b16 %v456
          %v489 = vunpack.c.l.b16 %v457
          %v490 = vunpack.c.l.b16 %v458
          %v491 = vunpack.c.l.b16 %v459
          %v492 = vunpack.c.l.b16 %v460
          %v493 = vunpack.c.l.b16 %v461
          %v494 = vpack.c.b16 %v479, %v478
          %v495 = vpack.c.b16 %v481, %v480
          %v496 = vpack.c.b16 %v483, %v482
          %v497 = vpack.c.b16 %v485, %v484
          %v498 = vpack.c.b16 %v487, %v486
          %v499 = vpack.c.b16 %v489, %v488
          %v500 = vpack.c.b16 %v491, %v490
          %v501 = vpack.c.b16 %v493, %v492
          %510 = vmatprep.subr.bf16.mxu0 0
          %511 = vmatpush1.bf16.msra.mxu0 %v494
          %512 = vmatprep.subr.bf16.mxu0 0
          %513 = vmatpush1.bf16.msra.mxu0 %v495
          %514 = vmatprep.subr.bf16.mxu0 0
          %515 = vmatpush1.bf16.msra.mxu0 %v496
          %516 = vmatprep.subr.bf16.mxu0 0
          %517 = vmatpush1.bf16.msra.mxu0 %v497
          %518 = vmatprep.subr.bf16.mxu0 0
          %519 = vmatpush1.bf16.msra.mxu0 %v498
          %520 = vmatprep.subr.bf16.mxu0 0
          %521 = vmatpush1.bf16.msra.mxu0 %v499
          %522 = vmatprep.subr.bf16.mxu0 0
          %523 = vmatpush1.bf16.msra.mxu0 %v500
          %524 = vmatprep.subr.bf16.mxu0 0
          %525 = vmatpush1.bf16.msra.mxu0 %v501
          %526 = vmatprep.subr.bf16.mxu0 0
          %527 = vmatpush1.bf16.msra.mxu0 0
          %528 = vmatprep.subr.bf16.mxu0 0
          %529 = vmatpush1.bf16.msra.mxu0 0
          %530 = vmatprep.subr.bf16.mxu0 0
          %531 = vmatpush1.bf16.msra.mxu0 0
          %532 = vmatprep.subr.bf16.mxu0 0
          %533 = vmatpush1.bf16.msra.mxu0 0
          %534 = vmatprep.subr.bf16.mxu0 0
          %535 = vmatpush1.bf16.msra.mxu0 0
          %536 = vmatprep.subr.bf16.mxu0 0
          %537 = vmatpush1.bf16.msra.mxu0 0
          %538 = vmatprep.subr.bf16.mxu0 0
          %539 = vmatpush1.bf16.msra.mxu0 0
          %540 = vmatprep.subr.bf16.mxu0 0
          %541 = vmatpush1.bf16.msra.mxu0 0
          %542 = vmatprep.mubr.bf16.mxu0 0
          %543 = vmatmul.mubr.bf16.gmra.mrb[0].mxu0 %v444
          %v544 = vpop.f32.mrb[0].mxu0
          %v545 = vadd.f32 0.0, %v544
          %v546 = vpop.f32.mrb[0].mxu0
          %v547 = vpop.f32.mrb[0].mxu0
          %v548 = vadd.f32 0.0, %v547
          %v549 = vpop.f32.mrb[0].mxu0
          %550 = vmatprep.mubr.bf16.mxu0 0
          %551 = vmatmul.mubr.bf16.gmra.mrb[0].mxu0 %v445
          %v552 = vpop.f32.mrb[0].mxu0
          %v553 = vadd.f32 0.0, %v552
          %v554 = vpop.f32.mrb[0].mxu0
          %v555 = vpop.f32.mrb[0].mxu0
          %v556 = vadd.f32 0.0, %v555
          %v557 = vpop.f32.mrb[0].mxu0
          %558 = vdwg.mxu0
          %v559 = vld [vmem:[%s297] sm:$0xff]
          %v560 = vld [vmem:[%s297 + $0x8] sm:$0xff]
          %v561 = vld [vmem:[%s297 + $0x10] sm:$0xff]
          %v562 = vld [vmem:[%s297 + $0x18] sm:$0xff]
          %564 = vset.pattern.permute.xlu0 0
          %565 = vperm.xlu0 %564, %v559
          %v566 = vpop.permute.xlu0 %565
          %569 = vset.pattern.permute.xlu0 0
          %570 = vperm.xlu0 %569, %v560
          %v571 = vpop.permute.xlu0 %570
          %574 = vset.pattern.permute.xlu0 0
          %575 = vperm.xlu0 %574, %v561
          %v576 = vpop.permute.xlu0 %575
          %579 = vset.pattern.permute.xlu0 0
          %580 = vperm.xlu0 %579, %v562
          %v581 = vpop.permute.xlu0 %580
          %v583 = vmul.f32 %v566, %v545
          %v584 = vmul.f32 %v571, %v548
          %v585 = vmul.f32 %v576, %v553
          %v586 = vmul.f32 %v581, %v556
          %v587 = vld [vmem:[%s4] sm:$0x1]
          %v589 = vlaneseq
          %v590 = vshrl.u32 %v589, 7
          %v591 = vsub.s32 0, %v590
          %v592 = vrot.slane %v587, %v591
          %v594 = vadd.f32 %v583, %v592
          %v595 = vadd.f32 %v584, %v592
          %v596 = vadd.f32 %v585, %v592
          %v597 = vadd.f32 %v586, %v592
          %v598 = vmax.f32 %v594, 0.0
          %v599 = vmax.f32 %v595, 0.0
          %v600 = vmax.f32 %v596, 0.0
          %v601 = vmax.f32 %v597, 0.0
          %v602 = vmul.f32 %v566, %v598
          %v603 = vmul.f32 %v571, %v599
          %v604 = vmul.f32 %v576, %v600
          %v605 = vmul.f32 %v581, %v601
          %v606 = vpack.c.bf16 %v603, %v602
          %v607 = vpack.c.bf16 %v605, %v604
          %v610 = vunpack.c.l.b16 %v606
          %v611 = vunpack.c.h.b16 %v606
          %v612 = vunpack.c.l.b16 %v607
          %v613 = vunpack.c.h.b16 %v607
          %v614 = vpack.c.b16 %v610, %v610
          %v615 = vpack.c.b16 %v611, %v611
          %v616 = vpack.c.b16 %v612, %v612
          %v617 = vpack.c.b16 %v613, %v613
          %622 = vst [vmem:[%s286] sm:$0xf] %v614
          %623 = vst [vmem:[%s286 + $0x4] sm:$0xf] %v615
          %624 = vst [vmem:[%s286 + $0x8] sm:$0xf] %v616
          %625 = vst [vmem:[%s286 + $0xc] sm:$0xf] %v617
        $region52: #{tpu_custom_call.1} parent=39 // pred_fallthru
          _
        %s626 = sand.u32 %s164, 1
        %s627 = scalar_lea.sflag [#allocation5], %s626
        %s628 = sand.u32 %s164, 1
        %s629 = smul.addr %s628, 16
        %s630 = scalar_lea.vmem [#allocation6], %s629
        // Predicated region
        $region53: #{tpu_custom_call.1} parent=39 // pred_check
          %p631 = pneg %p174
        $region54: #{tpu_custom_call.1} parent=39 // pred_check_branch
          %633 = sbr.rel (%p631) target = $region56
        $region55: #{tpu_custom_call.1} parent=39 // pred_region
          %s634 = smul.u32 4, %s26
          %s636 = ssub.s32 256, 256
          %637 = vsyncadd %s627, %s636
          %s638 = smul.addr %s634, 64
          %s639 = scalar_lea.hbm %s5, %s638
          %s640 = sshll.u32 %s630, 4
          %s641 = int_to_ptr.vmem [resolvable:$true] %s640
          %646 = dma.vmem_to_hbm [thread:$0]  %s641, 256, %s639, %s627, 64, 64, 4
        $region56: #{tpu_custom_call.1} parent=39 // pred_fallthru
          _
      $region40: #{tpu_custom_call.1} parent=5 // pred_fallthru
        _
      %p647 = scmp.le.s32.totalorder 2, %s17
      // Predicated region
      $region57: #{tpu_custom_call.1} parent=5 // pred_check
        %p648 = pneg %p647
      $region58: #{tpu_custom_call.1} parent=5 // pred_check_branch
        %650 = sbr.rel (%p648) target = $region60
      $region59: #{tpu_custom_call.1} parent=5 // pred_region
        %s651 = ssub.s32 %s17, 2
        // Predicated region
        $region61: #{tpu_custom_call.1} parent=59 // pred_check
          %p652 = pneg %p180
        $region62: #{tpu_custom_call.1} parent=59 // pred_check_branch
          %654 = sbr.rel (%p652) target = $region64
        $region63: #{tpu_custom_call.1} parent=59 // pred_region
          %s655 = sand.u32 %s165, 1
          %s656 = scalar_lea.sflag [#allocation5], %s655
          %s657 = sand.u32 %s165, 1
          %s658 = smul.addr %s657, 16
          %s659 = scalar_lea.vmem [#allocation6], %s658
          %660 = dma.done %s656, 256
        $region64: #{tpu_custom_call.1} parent=59 // pred_fallthru
          _
      $region60: #{tpu_custom_call.1} parent=5 // pred_fallthru
        _
    $region6: #{tpu_custom_call.1} parent=1 // loop_footer
      %s21 = sadd.s32 1, %s17
    $region7: #{tpu_custom_call.1} parent=1 // loop_footer_branch
      %16 = sbr.rel target = $region3
    $region8: #{tpu_custom_call.1} parent=1 // loop_exit
      _
    %661 = vsyncpa [#allocation4], 1
    %s662 = scalar_lea.sflag [#allocation4], 1
    %663 = vsyncpa %s662, 1
    %664 = vsyncpa [#allocation5], 1
    %s665 = scalar_lea.sflag [#allocation5], 1
    %666 = vsyncpa %s665, 1

</llo_original>
